<compile_context>
chip_gen: v5e
topology: v5e:2x2
jax: 0.10.0
libtpu: 0.0.40
codegen_flags: <defaults>
</compile_context>

<pallas_src>
from enum import Enum
from functools import partial

import numpy as np
import jax
import jax.numpy as jnp
from jax import lax
from jax.experimental import pallas as pl
from jax.experimental.pallas import tpu as pltpu


class BBoxType(Enum):
    XYXY = 0
    CXCYHW = 1


_LANE_TILE = 32768  # lanes per grid step; 2(in)+2(out) bufs * 8 sublanes * 32768 * 4B = 4 MiB


def _round_up(x, m):
    return ((x + m - 1) // m) * m


def _trans_box_kernel(boxes_ref, out_ref, *, pair_a, pair_b, coef_a, coef_b):
    """out[r, :] = boxes[pair_a[r], :] * coef_a[r] + boxes[pair_b[r], :] * coef_b[r].

    boxes_ref / out_ref: VMEM float32[4, TILE_N]; coordinate index on the sublane
    axis, box index lane-dense.  All coefficients are compile-time Python floats
    (image-size normalization already folded in), so the body is pure VPU work on
    full tiles: one vld, a few muls/adds/selects, one unmasked vst.
    """
    v = boxes_ref[...]                            # single full-tile load
    tn = v.shape[-1]
    rows = [v[r:r + 1, :] for r in range(4)]      # in-register sublane extracts

    parts = []
    for r in range(4):
        a = rows[pair_a[r]]
        p = a if coef_a[r] == 1.0 else a * coef_a[r]
        if coef_b[r] != 0.0:
            p = p + rows[pair_b[r]] * coef_b[r]
        parts.append(jnp.broadcast_to(p, (4, tn)))

    row_idx = lax.broadcasted_iota(jnp.int32, (4, tn), 0)
    out = parts[3]
    for r in (2, 1, 0):
        out = jnp.where(row_idx == r, parts[r], out)
    out_ref[...] = out                            # single unmasked full-tile store


def _conversion_plan(norm, from_type, to_type, h, w):
    """Static per-row (source row, coefficient) plan with the norm scale folded in."""
    inv_w = 1.0 / w if norm else 1.0
    inv_h = 1.0 / h if norm else 1.0

    if (from_type, to_type) == (BBoxType.XYXY, BBoxType.CXCYHW):
        # input rows [x1, y1, x2, y2] -> output rows [cx, cy, h, w]
        pair_a = (0, 1, 3, 2)
        pair_b = (2, 3, 1, 0)
        coef_a = (0.5 * inv_w, 0.5 * inv_h, inv_h, inv_w)
        coef_b = (0.5 * inv_w, 0.5 * inv_h, -inv_h, -inv_w)
        return pair_a, pair_b, coef_a, coef_b, True

    if (from_type, to_type) == (BBoxType.CXCYHW, BBoxType.XYXY):
        # input rows [cx, cy, bh, bw] -> output rows [x1, y1, x2, y2]
        # (the spec normalizes col2 by w and col3 by h regardless of bbox format)
        pair_a = (0, 1, 0, 1)
        pair_b = (3, 2, 3, 2)
        coef_a = (inv_w, inv_h, inv_w, inv_h)
        coef_b = (-0.5 * inv_h, -0.5 * inv_w, 0.5 * inv_h, 0.5 * inv_w)
        return pair_a, pair_b, coef_a, coef_b, True

    # No format conversion: plain per-column normalization (or identity).
    pair_a = (0, 1, 2, 3)
    pair_b = (0, 1, 2, 3)
    coef_a = (inv_w, inv_h, inv_w, inv_h)
    coef_b = (0.0, 0.0, 0.0, 0.0)
    return pair_a, pair_b, coef_a, coef_b, bool(norm)


def trans_box_coord(img, boxes, labels, *, norm=False, from_type=None, to_type=None):
    """JAX/Pallas equivalent of TransBoxCoord.forward(img, boxes, labels)."""
    h, w = img.shape[1], img.shape[2]             # img: (C, H, W); only its shape is read
    pair_a, pair_b, coef_a, coef_b, needs_kernel = _conversion_plan(
        norm, from_type, to_type, h, w)

    if not needs_kernel:                          # identity config: skip the launch entirely
        return img, boxes, labels

    boxes = jnp.asarray(boxes, jnp.float32)
    n = boxes.shape[0]

    n_pad = max(128, _round_up(n, 128))           # lane-dense padding
    if n_pad > _LANE_TILE:
        n_pad = _round_up(n, _LANE_TILE)
        tile_n = _LANE_TILE
    else:
        tile_n = n_pad

    # (N, 4) -> (4, N_pad): one coordinate per sublane row, box index on lanes.
    boxes_t = jnp.pad(boxes.T, ((0, 0), (0, n_pad - n)))

    out_t = pl.pallas_call(
        partial(_trans_box_kernel, pair_a=pair_a, pair_b=pair_b,
                coef_a=coef_a, coef_b=coef_b),
        out_shape=jax.ShapeDtypeStruct((4, n_pad), jnp.float32),
        grid=(n_pad // tile_n,),
        in_specs=[pl.BlockSpec((4, tile_n), lambda i: (0, i))],
        out_specs=pl.BlockSpec((4, tile_n), lambda i: (0, i)),
        compiler_params=pltpu.CompilerParams(
            dimension_semantics=("parallel",)),   # shards lane loop across v7x's 2 TCs
    )(boxes_t)

    boxes_out = out_t[:, :n].T                    # back to (N, 4)
    return img, boxes_out, labels


def _reference(img, boxes, labels, *, norm, from_type, to_type):
    """Pure-jnp reference reproducing the PyTorch semantics."""
    h, w = img.shape[1], img.shape[2]
    b = jnp.asarray(boxes, jnp.float32)
    if norm:
        b = jnp.stack([b[..., 0] / w, b[..., 1] / h,
                       b[..., 2] / w, b[..., 3] / h], -1)
    if (from_type, to_type) == (BBoxType.XYXY, BBoxType.CXCYHW):
        x1, y1, x2, y2 = b[..., 0], b[..., 1], b[..., 2], b[..., 3]
        b = jnp.stack([(x1 + x2) * 0.5, (y1 + y2) * 0.5, y2 - y1, x2 - x1], -1)
    elif (from_type, to_type) == (BBoxType.CXCYHW, BBoxType.XYXY):
        cx, cy, bh, bw = b[..., 0], b[..., 1], b[..., 2], b[..., 3]
        b = jnp.stack([cx - bw * 0.5, cy - bh * 0.5,
                       cx + bw * 0.5, cy + bh * 0.5], -1)
    return img, b, labels


if __name__ == "__main__":
    key = jax.random.PRNGKey(0)
    k_img, k_box, k_lbl = jax.random.split(key, 3)

    C, H, W = 3, 16, 16
    N = 8                                          # number of boxes
    img = jax.random.normal(k_img, (C, H, W), jnp.float32)
    # random xyxy boxes inside the image, with x2>=x1, y2>=y1
    pts = jax.random.uniform(k_box, (N, 4), jnp.float32, 0.0, float(W))
    x1 = jnp.minimum(pts[:, 0], pts[:, 2]); x2 = jnp.maximum(pts[:, 0], pts[:, 2])
    y1 = jnp.minimum(pts[:, 1], pts[:, 3]); y2 = jnp.maximum(pts[:, 1], pts[:, 3])
    boxes_in = jnp.stack([x1, y1, x2, y2], -1)
    labels = jax.random.randint(k_lbl, (N,), 0, 10)

    configs = [
        ("xyxy->cxcyhw + norm",
         dict(norm=True, from_type=BBoxType.XYXY, to_type=BBoxType.CXCYHW)),
        ("cxcyhw->xyxy, no norm",   # same numbers reinterpreted as (cx, cy, h, w)
         dict(norm=False, from_type=BBoxType.CXCYHW, to_type=BBoxType.XYXY)),
        ("norm only",
         dict(norm=True, from_type=None, to_type=None)),
        ("identity (short-circuit)",
         dict(norm=False, from_type=None, to_type=None)),
    ]

    for name, cfg in configs:
        img_o, boxes_o, labels_o = trans_box_coord(img, boxes_in, labels, **cfg)
        boxes_o = jax.block_until_ready(boxes_o)
        _, boxes_ref, _ = _reference(img, boxes_in, labels, **cfg)
        np.testing.assert_allclose(np.asarray(boxes_o), np.asarray(boxes_ref),
                                   rtol=1e-5, atol=1e-5,
                                   err_msg=f"mismatch for config: {name}")
        assert boxes_o.shape == boxes_in.shape and img_o.shape == img.shape

    print("KERNEL_OK")
</pallas_src>

<mosaic_0001>
module attributes {stable_mosaic.version = 11 : i64} {
  func.func @_trans_box_kernel(%arg0: i32, %arg1: memref<4x128xf32, #tpu.memory_space<vmem>>, %arg2: memref<4x128xf32, #tpu.memory_space<vmem>>) attributes {dimension_semantics = [#tpu.dimension_semantics<parallel>], iteration_bounds = array<i64: 1>, scalar_prefetch = 0 : i64, scratch_operands = 0 : i64, tpu.core_type = #tpu.core_type<tc>, window_params = [{transform_indices = @transform_0, window_bounds = array<i64: 4, 128>}, {transform_indices = @transform_1, window_bounds = array<i64: 4, 128>}]} {
    %c0 = arith.constant 0 : index
    %c0_0 = arith.constant 0 : index
    %0 = vector.load %arg1[%c0, %c0_0] : memref<4x128xf32, #tpu.memory_space<vmem>>, vector<4x128xf32>
    %1 = vector.extract_strided_slice %0 {offsets = [0, 0], sizes = [1, 128], strides = [1, 1]} : vector<4x128xf32> to vector<1x128xf32>
    %2 = vector.extract_strided_slice %0 {offsets = [1, 0], sizes = [1, 128], strides = [1, 1]} : vector<4x128xf32> to vector<1x128xf32>
    %3 = vector.extract_strided_slice %0 {offsets = [2, 0], sizes = [1, 128], strides = [1, 1]} : vector<4x128xf32> to vector<1x128xf32>
    %4 = vector.extract_strided_slice %0 {offsets = [3, 0], sizes = [1, 128], strides = [1, 1]} : vector<4x128xf32> to vector<1x128xf32>
    %cst = arith.constant 3.125000e-02 : f32
    %5 = vector.broadcast %cst : f32 to vector<1x128xf32>
    %6 = arith.mulf %1, %5 : vector<1x128xf32>
    %cst_1 = arith.constant 3.125000e-02 : f32
    %7 = vector.broadcast %cst_1 : f32 to vector<1x128xf32>
    %8 = arith.mulf %3, %7 : vector<1x128xf32>
    %9 = arith.addf %6, %8 : vector<1x128xf32>
    %10 = vector.shape_cast %9 : vector<1x128xf32> to vector<1x128xf32>
    %11 = vector.broadcast %10 : vector<1x128xf32> to vector<4x128xf32>
    %cst_2 = arith.constant 3.125000e-02 : f32
    %12 = vector.broadcast %cst_2 : f32 to vector<1x128xf32>
    %13 = arith.mulf %2, %12 : vector<1x128xf32>
    %cst_3 = arith.constant 3.125000e-02 : f32
    %14 = vector.broadcast %cst_3 : f32 to vector<1x128xf32>
    %15 = arith.mulf %4, %14 : vector<1x128xf32>
    %16 = arith.addf %13, %15 : vector<1x128xf32>
    %17 = vector.shape_cast %16 : vector<1x128xf32> to vector<1x128xf32>
    %18 = vector.broadcast %17 : vector<1x128xf32> to vector<4x128xf32>
    %cst_4 = arith.constant 6.250000e-02 : f32
    %19 = vector.broadcast %cst_4 : f32 to vector<1x128xf32>
    %20 = arith.mulf %4, %19 : vector<1x128xf32>
    %cst_5 = arith.constant -6.250000e-02 : f32
    %21 = vector.broadcast %cst_5 : f32 to vector<1x128xf32>
    %22 = arith.mulf %2, %21 : vector<1x128xf32>
    %23 = arith.addf %20, %22 : vector<1x128xf32>
    %24 = vector.shape_cast %23 : vector<1x128xf32> to vector<1x128xf32>
    %25 = vector.broadcast %24 : vector<1x128xf32> to vector<4x128xf32>
    %cst_6 = arith.constant 6.250000e-02 : f32
    %26 = vector.broadcast %cst_6 : f32 to vector<1x128xf32>
    %27 = arith.mulf %3, %26 : vector<1x128xf32>
    %cst_7 = arith.constant -6.250000e-02 : f32
    %28 = vector.broadcast %cst_7 : f32 to vector<1x128xf32>
    %29 = arith.mulf %1, %28 : vector<1x128xf32>
    %30 = arith.addf %27, %29 : vector<1x128xf32>
    %31 = vector.shape_cast %30 : vector<1x128xf32> to vector<1x128xf32>
    %32 = vector.broadcast %31 : vector<1x128xf32> to vector<4x128xf32>
    %33 = tpu.iota {dimensions = array<i32: 0>} : vector<4x128xi32>
    %c2_i32 = arith.constant 2 : i32
    %34 = vector.broadcast %c2_i32 : i32 to vector<4x128xi32>
    %35 = arith.cmpi eq, %33, %34 : vector<4x128xi32>
    %36 = arith.select %35, %25, %32 : vector<4x128xi1>, vector<4x128xf32>
    %c1_i32 = arith.constant 1 : i32
    %37 = vector.broadcast %c1_i32 : i32 to vector<4x128xi32>
    %38 = arith.cmpi eq, %33, %37 : vector<4x128xi32>
    %39 = arith.select %38, %18, %36 : vector<4x128xi1>, vector<4x128xf32>
    %c0_i32 = arith.constant 0 : i32
    %40 = vector.broadcast %c0_i32 : i32 to vector<4x128xi32>
    %41 = arith.cmpi eq, %33, %40 : vector<4x128xi32>
    %42 = arith.select %41, %11, %39 : vector<4x128xi1>, vector<4x128xf32>
    %c0_8 = arith.constant 0 : index
    %c0_9 = arith.constant 0 : index
    %43 = vector.load %arg2[%c0_8, %c0_9] : memref<4x128xf32, #tpu.memory_space<vmem>>, vector<4x128xf32>
    tpu.vector_store %arg2[%c0_8, %c0_9], %42 {strides = array<i32>} : memref<4x128xf32, #tpu.memory_space<vmem>>, vector<4x128xf32>,
    return
  }
  func.func @transform_0(%arg0: i32) -> (i32, i32) {
    %c0_i32 = arith.constant 0 : i32
    %c0_i32_0 = arith.constant 0 : i32
    return %c0_i32, %arg0 : i32, i32
  }
  func.func @transform_1(%arg0: i32) -> (i32, i32) {
    %c0_i32 = arith.constant 0 : i32
    %c0_i32_0 = arith.constant 0 : i32
    return %c0_i32, %arg0 : i32, i32
  }
}

</mosaic_0001>

<llo_original>
// kernel: tpu_custom_call.1
$region0: #{tpu_custom_call.1}
  #allocation0 [shape = 'u32[]', space=smem, size = 0x4, offset = 0x4, fixed_abs, tag = 'smem constant byte address 0x4 - core index']
  #allocation1 [shape = 'u32[72,128]{1,0:T(1,128)}', space=vmem, size = 0x9000, scoped, tag = 'internal scratch']
  %s0 = inlined_call_operand.hbm [shape: f32[4,128], index: 0, kind: input, shape index: {}]
  %s1 = inlined_call_operand.hbm [shape: f32[4,128], index: 1, kind: output, shape index: {}]
  %s2 = sld [smem:[#allocation0]]
  $region18: #{tpu_custom_call.1} parent=0
    _
  %s4 = ssub.s32 1, %s2
  %s5 = scalar_select 0, %s4, %s2
  $region1: #{tpu_custom_call.1} parent=0
    #allocation2 [shape = 'u8[2048]{0}', space=vmem, size = 0x800, scoped, tag = 'input window, operand 0, single buffered']
    #allocation3 [shape = 's32[1]{0}', space=sflag, size = 0x4, scoped, tag = 'scoped memory for tpu_custom_call.1']
    #allocation4 [shape = 's32[1]{0}', space=sflag, size = 0x4, scoped, tag = 'scoped memory for tpu_custom_call.1']
    #allocation5 [shape = 'u8[2048]{0}', space=vmem, size = 0x800, scoped, tag = 'output window, operand 0, single buffered']
    %6 = vsyncpa [#allocation3], 0
    %7 = vsyncpa [#allocation4], 0
    // Predicated region
    $region2: #{tpu_custom_call.1} parent=1 // pred_check
      _
    $region3: #{tpu_custom_call.1} parent=1 // pred_check_branch
      %9 = sbr.rel (0) target = $region5
    $region4: #{tpu_custom_call.1} parent=1 // pred_region
      %11 = vsyncadd [#allocation3], 0
      %s13 = sshll.u32 %s0, 4
      %s14 = int_to_ptr.hbm [resolvable:$true] %s13
      %s15 = sshll.u32 [#allocation2], 4
      %s16 = int_to_ptr.vmem [resolvable:$true] %s15
      %18 = dma.hbm_to_vmem [thread:$0]  %s14, 64, %s16, [#allocation3]
    $region5: #{tpu_custom_call.1} parent=1 // pred_fallthru
      _
    // Predicated region
    $region6: #{tpu_custom_call.1} parent=1 // pred_check
      _
    $region7: #{tpu_custom_call.1} parent=1 // pred_check_branch
      %20 = sbr.rel (0) target = $region9
    $region8: #{tpu_custom_call.1} parent=1 // pred_region
      %22 = dma.done [#allocation3], 64
    $region9: #{tpu_custom_call.1} parent=1 // pred_fallthru
      _
    %v23 = vld [vmem:[#allocation2] sm:$0xf]
    %v24 = vmul.f32 %v23, 0.03125
    %v26 = vrot.slane %v24, 2
    %v28 = vadd.f32 %v24, %v26
    %v29 = vperm.slane %v28, 0
    %v30 = vperm.slane %v28, 1
    %v31 = vmul.f32 %v23, 0.0625
    %v32 = vmul.f32 %v23, -0.0625
    %v34 = vrot.slane %v32, 6
    %v36 = vadd.f32 %v31, %v34
    %v37 = vperm.slane %v36, 3
    %v38 = vperm.slane %v36, 2
    %v39 = vlaneseq
    %v40 = vshrl.u32 %v39, 7
    %vm41 = vcmp.eq.s32.totalorder %v40, 2
    %v42 = vsel %vm41, %v37, %v38
    %vm43 = vcmp.eq.s32.totalorder %v40, 1
    %v44 = vsel %vm43, %v30, %v42
    %vm45 = vcmp.eq.s32.totalorder %v40, 0
    %v46 = vsel %vm45, %v29, %v44
    %47 = vst [vmem:[#allocation5] sm:$0xf] %v46
    // Predicated region
    $region10: #{tpu_custom_call.1} parent=1 // pred_check
      _
    $region11: #{tpu_custom_call.1} parent=1 // pred_check_branch
      %49 = sbr.rel (0) target = $region13
    $region12: #{tpu_custom_call.1} parent=1 // pred_region
      %51 = vsyncadd [#allocation4], 0
      %s53 = sshll.u32 [#allocation5], 4
      %s54 = int_to_ptr.vmem [resolvable:$true] %s53
      %s55 = sshll.u32 %s1, 4
      %s56 = int_to_ptr.hbm [resolvable:$true] %s55
      %58 = dma.vmem_to_hbm [thread:$0]  %s54, 64, %s56, [#allocation4]
    $region13: #{tpu_custom_call.1} parent=1 // pred_fallthru
      _
    // Predicated region
    $region14: #{tpu_custom_call.1} parent=1 // pred_check
      _
    $region15: #{tpu_custom_call.1} parent=1 // pred_check_branch
      %60 = sbr.rel (0) target = $region17
    $region16: #{tpu_custom_call.1} parent=1 // pred_region
      %62 = dma.done [#allocation4], 64
    $region17: #{tpu_custom_call.1} parent=1 // pred_fallthru
      _
    %63 = vsyncpa [#allocation3], 1
    %64 = vsyncpa [#allocation4], 1

</llo_original>
